<compile_context>
chip_gen: v7x
topology: tpu7x:2x2x1
jax: 0.10.0
libtpu: 0.0.40
codegen_flags: <defaults>
</compile_context>

<pallas_src>
import functools

import jax
import jax.numpy as jnp
from jax import lax
from jax.experimental import pallas as pl
from jax.experimental.pallas import tpu as pltpu

_TARGET_BYTES = 4 << 20      # ~4 MiB of input per grid step (review: 2-4 MiB)
_MAX_BLOCK_BYTES = 6 << 20   # hard cap for a single input block
_VMEM_LIMIT = 48 << 20       # <= ~48 MiB so the same config fits v7x (64 MiB)
_SUBLANE = {4: 8, 2: 16, 1: 32}   # dtype itemsize -> sublane tile


def _round_up(a, b):
    return ((a + b - 1) // b) * b


def _sublane(dtype):
    return _SUBLANE.get(jnp.dtype(dtype).itemsize, 8)


# ---------------------------------------------------------------------------
# Kernels
# ---------------------------------------------------------------------------
def _l1_mean_axis1_kernel(x_ref, o_ref, *, inv_r):
    """mean(|x|) over axis 1 of the block (works for 2-D and 3-D blocks)."""
    s = jnp.sum(jnp.abs(x_ref[...]).astype(jnp.float32), axis=1, keepdims=True)
    o_ref[...] = (s * inv_r).astype(o_ref.dtype)


def _l1_mean_axis1_acc_kernel(x_ref, o_ref, acc_ref, *, inv_r, t_r, r_total,
                              need_mask):
    """Accumulating variant: reduction axis R tiled over the last grid axis."""
    r = pl.program_id(2)

    @pl.when(r == 0)
    def _():
        acc_ref[...] = jnp.zeros_like(acc_ref)

    a = jnp.abs(x_ref[...]).astype(jnp.float32)          # (t_p, t_r, t_q)
    if need_mask:  # static: only emitted when R % t_r != 0
        i1 = lax.broadcasted_iota(jnp.int32, a.shape, 1)
        a = jnp.where(r * t_r + i1 < r_total, a, 0.0)
    acc_ref[...] += jnp.sum(a, axis=1, keepdims=True)

    @pl.when(r == pl.num_programs(2) - 1)
    def _():
        o_ref[...] = (acc_ref[...] * inv_r).astype(o_ref.dtype)


def _l1_abs_colsum_kernel(x_ref, o_ref, *, rows, rpb, bps, need_mask):
    """Global path: per-split (1, LANES) f32 running column sums of |x|."""
    c = pl.program_id(0)
    b = pl.program_id(1)

    @pl.when(b == 0)
    def _():
        o_ref[...] = jnp.zeros_like(o_ref)

    a = jnp.abs(x_ref[...]).astype(jnp.float32)          # (rpb, lanes)
    if need_mask:  # static: only emitted when the tiling is ragged
        blk = c * bps + b                                # logical block index
        row = lax.broadcasted_iota(jnp.int32, a.shape, 0)
        a = jnp.where(blk * rpb + row < rows, a, 0.0)
    o_ref[...] += jnp.sum(a, axis=0, keepdims=True)[None]


def _l1_abs_sum_whole_kernel(x_ref, o_ref):
    """Whole-array single-block |x| sum (fallback for small/odd-sized tensors)."""
    o_ref[...] = jnp.sum(jnp.abs(x_ref[...]).astype(jnp.float32))[None, None]


# ---------------------------------------------------------------------------
# Per-dim wrapper
# ---------------------------------------------------------------------------
def _l1_mean_over_dim(x, dim, *, target_bytes=_TARGET_BYTES,
                      max_block_bytes=_MAX_BLOCK_BYTES):
    """mean(|x|, dim=dim, keepdim=True) without any transpose / relayout."""
    ndim = x.ndim
    dim = dim % ndim
    shape = x.shape
    out_shape = shape[:dim] + (1,) + shape[dim + 1:]

    P = 1
    for s in shape[:dim]:
        P *= s
    R = shape[dim]
    Q = 1
    for s in shape[dim + 1:]:
        Q *= s

    itemsize = jnp.dtype(x.dtype).itemsize
    sub = _sublane(x.dtype)

    # ---- trailing-axis reduction (Q == 1): 2D (P, R), reduce over lanes ----
    if Q == 1:
        x2 = x.reshape(P, R)
        row_bytes = max(1, R * itemsize)
        t_p = max(sub, (target_bytes // row_bytes) // sub * sub)
        if t_p >= P:
            t_p = P
        n_p = pl.cdiv(P, t_p)
        # TODO(synk): if R alone makes a (sub, R) block exceed the VMEM budget
        # this path should additionally tile R (only hit for R > ~1e5).
        out2 = pl.pallas_call(
            functools.partial(_l1_mean_axis1_kernel, inv_r=1.0 / R),
            out_shape=jax.ShapeDtypeStruct((P, 1), x.dtype),
            grid=(n_p,),
            in_specs=[pl.BlockSpec((t_p, R), lambda i: (i, 0))],
            out_specs=pl.BlockSpec((t_p, 1), lambda i: (i, 0)),
            compiler_params=pltpu.CompilerParams(
                dimension_semantics=("parallel",),
                vmem_limit_bytes=_VMEM_LIMIT),
        )(x2)
        return out2.reshape(out_shape)

    # ---- general mid-axis reduction: 3D (P, R, Q), reduce over the middle ----
    x3 = x.reshape(P, R, Q)  # pure reshape: no data movement

    col_bytes = max(1, R * itemsize)
    if Q * col_bytes <= max_block_bytes or Q < 128:
        t_q = Q                                  # full trailing extent (legal)
    else:
        t_q = max(128, (max_block_bytes // col_bytes // 128) * 128)
        t_q = min(t_q, (Q // 128) * 128)

    tile_r = R * t_q * itemsize > max_block_bytes
    if tile_r:
        t_r = max(sub, (max_block_bytes // max(1, t_q * itemsize)) // sub * sub)
        if t_r >= R:
            t_r = R
            tile_r = False
    else:
        t_r = R

    step_bytes = max(1, t_r * t_q * itemsize)
    t_p = max(1, min(P, target_bytes // step_bytes))  # batch leading dim

    n_p = pl.cdiv(P, t_p)
    n_q = pl.cdiv(Q, t_q)
    n_r = pl.cdiv(R, t_r)
    p_first = n_p >= n_q   # larger parallel extent leads (v7x megacore)

    if n_r == 1:
        kernel = functools.partial(_l1_mean_axis1_kernel, inv_r=1.0 / R)
        if p_first:
            grid = (n_p, n_q)
            in_map = lambda p, q: (p, 0, q)
            out_map = lambda p, q: (p, 0, q)
        else:
            grid = (n_q, n_p)
            in_map = lambda q, p: (p, 0, q)
            out_map = lambda q, p: (p, 0, q)
        out3 = pl.pallas_call(
            kernel,
            out_shape=jax.ShapeDtypeStruct((P, 1, Q), x.dtype),
            grid=grid,
            in_specs=[pl.BlockSpec((t_p, R, t_q), in_map)],
            out_specs=pl.BlockSpec((t_p, 1, t_q), out_map),
            compiler_params=pltpu.CompilerParams(
                dimension_semantics=("parallel", "parallel"),
                vmem_limit_bytes=_VMEM_LIMIT),
        )(x3)
    else:
        kernel = functools.partial(
            _l1_mean_axis1_acc_kernel, inv_r=1.0 / R, t_r=t_r, r_total=R,
            need_mask=(R % t_r != 0))
        if p_first:
            grid = (n_p, n_q, n_r)
            in_map = lambda p, q, r: (p, r, q)
            out_map = lambda p, q, r: (p, 0, q)
        else:
            grid = (n_q, n_p, n_r)
            in_map = lambda q, p, r: (p, r, q)
            out_map = lambda q, p, r: (p, 0, q)
        out3 = pl.pallas_call(
            kernel,
            out_shape=jax.ShapeDtypeStruct((P, 1, Q), x.dtype),
            grid=grid,
            in_specs=[pl.BlockSpec((t_p, t_r, t_q), in_map)],
            out_specs=pl.BlockSpec((t_p, 1, t_q), out_map),
            scratch_shapes=[pltpu.VMEM((t_p, 1, t_q), jnp.float32)],
            compiler_params=pltpu.CompilerParams(
                dimension_semantics=("parallel", "parallel", "arbitrary"),
                vmem_limit_bytes=_VMEM_LIMIT),
        )(x3)

    return out3.reshape(out_shape)


# ---------------------------------------------------------------------------
# Global (scalar) wrapper
# ---------------------------------------------------------------------------
def _streaming_abs_sum(x2, target_bytes):
    """f32 sum of |x2| for a 2-D (rows, lanes) view, streamed over row blocks."""
    rows, lanes = x2.shape
    itemsize = jnp.dtype(x2.dtype).itemsize
    sub = _sublane(x2.dtype)

    rpb = max(sub, (target_bytes // max(1, lanes * itemsize)) // sub * sub)
    if rpb >= rows:
        rpb = rows                       # single full-extent block (legal)
        nblk = 1
    else:
        nblk = pl.cdiv(rows, rpb)
    splits = 2 if nblk >= 2 else 1       # >=2-extent parallel axis for v7x
    bps = pl.cdiv(nblk, splits)
    need_mask = (splits * bps * rpb) != rows

    kernel = functools.partial(_l1_abs_colsum_kernel, rows=rows, rpb=rpb,
                               bps=bps, need_mask=need_mask)
    partials = pl.pallas_call(
        kernel,
        out_shape=jax.ShapeDtypeStruct((splits, 1, lanes), jnp.float32),
        grid=(splits, bps),
        in_specs=[pl.BlockSpec(
            (rpb, lanes),
            # clamp duplicated tail blocks in-bounds; the kernel mask zeroes
            # their contribution using the *logical* block index.
            lambda c, b: (jnp.minimum(c * bps + b, nblk - 1), 0))],
        out_specs=pl.BlockSpec((1, 1, lanes), lambda c, b: (c, 0, 0)),
        compiler_params=pltpu.CompilerParams(
            dimension_semantics=("parallel", "arbitrary"),
            vmem_limit_bytes=_VMEM_LIMIT),
    )(x2)
    return jnp.sum(partials)


def _l1_mean_all(x, *, target_bytes=_TARGET_BYTES):
    """mean(|x|) over every element: pad-free tiled streaming f32 accumulation."""
    n = x.size
    dtype = x.dtype
    itemsize = jnp.dtype(dtype).itemsize
    sub = _sublane(dtype)

    lanes = None
    for cand in (1024, 512, 256, 128):
        if n % cand == 0:
            lanes = cand
            break

    if lanes is not None:
        s = _streaming_abs_sum(x.reshape(n // lanes, lanes), target_bytes)
    else:
        # Tensor size not a multiple of 128: no free lane-dense 2-D view.
        x2 = x.reshape(1, n)
        padded_vmem = _round_up(1, sub) * _round_up(n, 128) * itemsize
        if padded_vmem <= (8 << 20):
            out = pl.pallas_call(
                _l1_abs_sum_whole_kernel,
                out_shape=jax.ShapeDtypeStruct((1, 1), jnp.float32),
            )(x2)
            s = out[0, 0]
        else:
            # TODO(synk): rare large & 128-unaligned tensors pay one extra HBM
            # pass for the zero pad (exact for an |x| sum); a manual-DMA kernel
            # over pl.ANY could avoid it.
            pad = _round_up(n, 1024) - n
            flat = jnp.pad(x.reshape(-1), (0, pad))
            s = _streaming_abs_sum(flat.reshape(-1, 1024), target_bytes)

    return (s * (1.0 / n)).astype(dtype)


# ---------------------------------------------------------------------------
# Module
# ---------------------------------------------------------------------------
class L1Scaling:
    """JAX/Pallas re-implementation of the PyTorch L1Scaling module.

    Faithful to the torch `if self.dim:` — dim=None AND dim=0 both take the
    global-scalar path (falsy dim).
    """

    def __init__(self, dim):
        self.dim = dim  # no trainable parameters in this module

    @functools.partial(jax.jit, static_argnums=0)
    def forward(self, x):
        if self.dim:
            scale = _l1_mean_over_dim(x, self.dim)
        else:
            scale = _l1_mean_all(x)
        # TODO(synk): torch's .detach() has no tape here; this forward-only
        # implementation never differentiates through `scale`.
        return (x, scale)

    def inverse(self, x, scale):
        return x * scale


# ---------------------------------------------------------------------------
# Demo / self-check
# ---------------------------------------------------------------------------
if __name__ == "__main__":
    key = jax.random.PRNGKey(0)
    x = jax.random.normal(key, (2, 4, 16, 16), dtype=jnp.float32)

    # 1) dim=1: channel-wise mean of |x| (keepdim)
    mod1 = L1Scaling(dim=1)
    x_out, scale1 = mod1.forward(x)
    jax.block_until_ready((x_out, scale1))
    ref1 = jnp.mean(jnp.abs(x), axis=1, keepdims=True)
    assert scale1.shape == (2, 1, 16, 16)
    assert jnp.allclose(scale1, ref1, rtol=1e-5, atol=1e-6)
    assert jnp.array_equal(x_out, x)

    # 2) dim=2: general mid-axis reduction (small trailing extent)
    _, scale2 = L1Scaling(dim=2).forward(x)
    ref2 = jnp.mean(jnp.abs(x), axis=2, keepdims=True)
    assert scale2.shape == (2, 4, 1, 16)
    assert jnp.allclose(scale2, ref2, rtol=1e-5, atol=1e-6)

    # 3) dim=3: trailing-axis reduction (dedicated 2-D lane-reduce path)
    _, scale3 = L1Scaling(dim=3).forward(x)
    ref3 = jnp.mean(jnp.abs(x), axis=3, keepdims=True)
    assert scale3.shape == (2, 4, 16, 1)
    assert jnp.allclose(scale3, ref3, rtol=1e-5, atol=1e-6)

    # 4) dim=None (falsy) -> global scalar mean of |x| (pad-free streaming)
    _, scale_all = L1Scaling(dim=None).forward(x)
    ref_all = jnp.mean(jnp.abs(x))
    assert scale_all.shape == ()
    assert jnp.allclose(scale_all, ref_all, rtol=1e-5, atol=1e-6)

    # 5) force the R-tiled accumulating kernel (tiny block-budget override)
    xr = jax.random.normal(jax.random.PRNGKey(1), (4, 48, 256), jnp.float32)
    scale_r = _l1_mean_over_dim(xr, 1, target_bytes=32 * 1024,
                                max_block_bytes=16 * 1024)
    jax.block_until_ready(scale_r)
    assert jnp.allclose(scale_r, jnp.mean(jnp.abs(xr), axis=1, keepdims=True),
                        rtol=1e-5, atol=1e-6)

    # 6) force the masked / 2-split streaming global path
    xg = jax.random.normal(jax.random.PRNGKey(2), (80, 128), jnp.float32)
    s_g = _l1_mean_all(xg, target_bytes=32 * 1024)
    jax.block_until_ready(s_g)
    assert jnp.allclose(s_g, jnp.mean(jnp.abs(xg)), rtol=1e-5, atol=1e-6)

    # 7) odd-sized tensor -> whole-block fallback (no 128-divisible flat view)
    xo = jax.random.normal(jax.random.PRNGKey(3), (3, 5, 7), jnp.float32)
    s_o = _l1_mean_all(xo)
    jax.block_until_ready(s_o)
    assert jnp.allclose(s_o, jnp.mean(jnp.abs(xo)), rtol=1e-5, atol=1e-6)

    # 8) bfloat16 exercises the 16-row sublane-tile handling
    xb = x.astype(jnp.bfloat16)
    _, scale_b = L1Scaling(dim=1).forward(xb)
    jax.block_until_ready(scale_b)
    ref_b = jnp.mean(jnp.abs(xb.astype(jnp.float32)), axis=1, keepdims=True)
    assert jnp.allclose(scale_b.astype(jnp.float32), ref_b, rtol=2e-2, atol=2e-2)

    # inverse() round-trip sanity
    inv = mod1.inverse(x_out, scale1)
    jax.block_until_ready(inv)
    assert inv.shape == x.shape

    print("KERNEL_OK")
</pallas_src>

<mosaic_0001>
module attributes {stable_mosaic.version = 11 : i64} {
  func.func @_l1_mean_axis1_kernel(%arg0: i32, %arg1: i32, %arg2: memref<2x4x256xf32, #tpu.memory_space<vmem>>, %arg3: memref<2x1x256xf32, #tpu.memory_space<vmem>>) attributes {dimension_semantics = [#tpu.dimension_semantics<parallel>, #tpu.dimension_semantics<parallel>], iteration_bounds = array<i64: 1, 1>, scalar_prefetch = 0 : i64, scratch_operands = 0 : i64, tpu.core_type = #tpu.core_type<tc>, window_params = [{transform_indices = @transform_0, window_bounds = array<i64: 2, 4, 256>}, {transform_indices = @transform_1, window_bounds = array<i64: 2, 1, 256>}]} {
    %c0 = arith.constant 0 : index
    %c0_0 = arith.constant 0 : index
    %c0_1 = arith.constant 0 : index
    %0 = vector.load %arg2[%c0, %c0_0, %c0_1] : memref<2x4x256xf32, #tpu.memory_space<vmem>>, vector<2x4x256xf32>
    %1 = math.absf %0 : vector<2x4x256xf32>
    %cst = arith.constant dense<0.000000e+00> : vector<2x256xf32>
    %2 = vector.multi_reduction <add>, %1, %cst [1] : vector<2x4x256xf32> to vector<2x256xf32>
    %3 = vector.shape_cast %2 : vector<2x256xf32> to vector<2x1x256xf32>
    %cst_2 = arith.constant 2.500000e-01 : f32
    %4 = vector.broadcast %cst_2 : f32 to vector<2x1x256xf32>
    %5 = arith.mulf %3, %4 : vector<2x1x256xf32>
    %c0_3 = arith.constant 0 : index
    %c0_4 = arith.constant 0 : index
    %c0_5 = arith.constant 0 : index
    %6 = vector.load %arg3[%c0_3, %c0_4, %c0_5] : memref<2x1x256xf32, #tpu.memory_space<vmem>>, vector<2x1x256xf32>
    tpu.vector_store %arg3[%c0_3, %c0_4, %c0_5], %5 {strides = array<i32>} : memref<2x1x256xf32, #tpu.memory_space<vmem>>, vector<2x1x256xf32>,
    return
  }
  func.func @transform_0(%arg0: i32, %arg1: i32) -> (i32, i32, i32) {
    %c0_i32 = arith.constant 0 : i32
    %c0_i32_0 = arith.constant 0 : i32
    return %arg0, %c0_i32, %arg1 : i32, i32, i32
  }
  func.func @transform_1(%arg0: i32, %arg1: i32) -> (i32, i32, i32) {
    %c0_i32 = arith.constant 0 : i32
    %c0_i32_0 = arith.constant 0 : i32
    return %arg0, %c0_i32, %arg1 : i32, i32, i32
  }
}

</mosaic_0001>

<llo_original>
// kernel: forward.1
$region0: #{forward.1}
  #allocation0 [shape = 'u32[]', space=smem, size = 0x4, offset = 0x4, fixed_abs, tag = 'smem constant byte address 0x4 - core index']
  #allocation1 [shape = 'u32[144,128]{1,0:T(1,128)}', space=vmem, size = 0x12000, scoped, tag = 'internal scratch']
  %s0 = inlined_call_operand.vmem [shape: f32[2,4,256], index: 0, kind: input, shape index: {}]
  %s1 = inlined_call_operand.vmem [shape: f32[2,1,256], index: 1, kind: output, shape index: {}]
  %s2 = sld [smem:[#allocation0]]
  $region14: #{forward.1} parent=0
    _
  %s4 = ssub.s32 1, %s2
  %s5 = scalar_select 0, %s4, %s2
  // Predicated region
  $region2: #{forward.1} parent=0 // pred_check
    _
  $region3: #{forward.1} parent=0 // pred_check_branch
    %7 = sbr.rel (0) target = $region5
  $region4: #{forward.1} parent=0 // pred_region
    _
  $region5: #{forward.1} parent=0 // pred_fallthru
    _
  %v8 = vld [vmem:[%s0] sm:$0xff]
  %v9 = vld [vmem:[%s0 + $0x8] sm:$0xff]
  %v10 = vand.u32 2147483647, %v8
  %v11 = vand.u32 2147483647, %v9
  %v14 = vcombine.high %v10, %v10
  %v15 = vcombine.high %v11, %v11
  %vm18 = vcmask 1043456
  %v19 = vsel %vm18, %v10, 0.0
  %v20 = vrot.slane %v19, 4
  %v21 = vadd.f32 %v19, %v20
  %v22 = vrot.slane %v21, 2
  %v23 = vadd.f32 %v21, %v22
  %v24 = vrot.slane %v23, 1
  %v25 = vadd.f32 %v23, %v24
  %v26 = vsel %vm18, %v14, 0.0
  %v27 = vrot.slane %v26, 4
  %v28 = vadd.f32 %v26, %v27
  %v29 = vrot.slane %v28, 2
  %v30 = vadd.f32 %v28, %v29
  %v31 = vrot.slane %v30, 1
  %v32 = vadd.f32 %v30, %v31
  %v33 = vsel %vm18, %v11, 0.0
  %v34 = vrot.slane %v33, 4
  %v35 = vadd.f32 %v33, %v34
  %v36 = vrot.slane %v35, 2
  %v37 = vadd.f32 %v35, %v36
  %v38 = vrot.slane %v37, 1
  %v39 = vadd.f32 %v37, %v38
  %v40 = vsel %vm18, %v15, 0.0
  %v41 = vrot.slane %v40, 4
  %v42 = vadd.f32 %v40, %v41
  %v43 = vrot.slane %v42, 2
  %v44 = vadd.f32 %v42, %v43
  %v45 = vrot.slane %v44, 1
  %v46 = vadd.f32 %v44, %v45
  %v47 = vmul.f32 %v25, 0.25
  %v48 = vmul.f32 %v32, 0.25
  %v49 = vmul.f32 %v39, 0.25
  %v50 = vmul.f32 %v46, 0.25
  %v55 = vcombine.low %v47, %v48
  %v57 = vunpack.c.l.s4 1966171168
  %v58 = vunpack.c.0.s8 %v57
  %v59 = vlaneseq
  %v60 = vshrl.u32 %v59, 7
  %v61 = vsub.s32 %v58, %v60
  %v62 = vrot.slane %v55, %v61
  %v64 = vunpack.c.l.s4 1966171168
  %v65 = vunpack.c.0.s8 %v64
  %v66 = vlaneseq
  %v67 = vshrl.u32 %v66, 7
  %v68 = vsub.s32 %v65, %v67
  %v69 = vrot.slane %v62, %v68
  %v70 = vcombine.low %v49, %v50
  %v72 = vunpack.c.l.s4 1966171168
  %v73 = vunpack.c.0.s8 %v72
  %v74 = vlaneseq
  %v75 = vshrl.u32 %v74, 7
  %v76 = vsub.s32 %v73, %v75
  %v77 = vrot.slane %v70, %v76
  %v79 = vunpack.c.l.s4 1966171168
  %v80 = vunpack.c.0.s8 %v79
  %v81 = vlaneseq
  %v82 = vshrl.u32 %v81, 7
  %v83 = vsub.s32 %v80, %v82
  %v84 = vrot.slane %v77, %v83
  %v87 = vlaneseq
  %vm88 = vcmp.ge.s32.totalorder %v87, 0
  %vm89 = vcmp.lt.s32.totalorder %v87, 256
  %vm90 = vmand %vm88, %vm89
  %91 = vst.msk [vmem:[%s1] sm:$0x3] %vm90, %v69
  %92 = vst.msk [vmem:[%s1 + $0x2] sm:$0x3] %vm90, %v84
  // Predicated region
  $region6: #{forward.1} parent=0 // pred_check
    _
  $region7: #{forward.1} parent=0 // pred_check_branch
    %94 = sbr.rel (0) target = $region9
  $region8: #{forward.1} parent=0 // pred_region
    _
  $region9: #{forward.1} parent=0 // pred_fallthru
    _
  // Predicated region
  $region10: #{forward.1} parent=0 // pred_check
    _
  $region11: #{forward.1} parent=0 // pred_check_branch
    %96 = sbr.rel (0) target = $region13
  $region12: #{forward.1} parent=0 // pred_region
    _
  $region13: #{forward.1} parent=0 // pred_fallthru
    _

</llo_original>
